<compile_context>
chip_gen: v7x
topology: tpu7x:2x2x1
jax: 0.10.0
libtpu: 0.0.40
codegen_flags: <defaults>
</compile_context>

<pallas_src>
import jax
import jax.numpy as jnp
from jax import lax
from jax.experimental import pallas as pl
from jax.experimental.pallas import tpu as pltpu

NEG_SLOPE = 0.2


def gat_pointer_kernel(x_ref, w_ref, att_ref, edge_ref, probs_ref):
    # One graph per grid step.
    #   x_ref     [1, N, F_in]   node features
    #   w_ref     [F_in, H]      GAT linear weight (shared; block index fixed at (0,0))
    #   att_ref   [3, H]         packed params: row0=att_src, row1=att_dst, row2=w_dec
    #   edge_ref  [1, 2, E]      edge_index int32 (row0=src, row1=dst)
    #   probs_ref [1, 1, N]      per-graph output probabilities (lane-dense row)
    n = x_ref.shape[1]
    f_in = x_ref.shape[2]
    n_e = edge_ref.shape[2]

    x = x_ref[0].astype(jnp.float32)                              # [N, F_in]
    w = w_ref[...].astype(jnp.float32)                            # [F_in, H]
    att_src = att_ref[0:1, :]                                     # [1, H]
    att_dst = att_ref[1:2, :]                                     # [1, H]
    w_dec = att_ref[2:3, :]                                       # [1, H]

    # --- GATConv linear transform. F_in is tiny (=2): a K=2 matmul wastes a full
    #     MXU push, so expand into F_in VPU FMAs instead. ---
    h = x[:, 0:1] * w[0:1, :]
    for f in range(1, f_in):
        h = h + x[:, f:f + 1] * w[f:f + 1, :]                     # [N, H]

    # --- per-node scores (VPU mul + lane reduce). Decoder weight folded here:
    #     logits_i = sum_j alpha[i,j] * (h_j . w_dec); the dropped b_gat.w_dec + b_dec
    #     is constant across nodes and cancels in the final softmax. ---
    a_src = jnp.sum(h * att_src, axis=-1, keepdims=True)          # [N, 1]
    a_dst = jnp.sum(h * att_dst, axis=-1, keepdims=True)          # [N, 1]
    s = jnp.sum(h * w_dec, axis=-1, keepdims=True)                # [N, 1]

    a_src_row = a_src.T                                           # [1, N] (single XLU transpose)
    s_row = s.T                                                   # [1, N]

    # e[i, j] = leaky_relu(a_dst[i] + a_src[j])
    e = a_dst + a_src_row                                         # [N, N]
    e = jnp.where(e > 0, e, NEG_SLOPE * e)

    # --- adjacency mask built in-kernel from edge_index (no XLA scatter / no dense
    #     [N,N] HBM round-trip). bf16 one-hots feed the MXU; 0/1 values are exact in
    #     bf16 and accumulation is f32. Duplicate edges collapse (set semantics). ---
    edge = edge_ref[0]                                            # [2, E] int32
    src = edge[0:1, :]                                            # [1, E]
    dst = edge[1:2, :]                                            # [1, E]
    node_ids = lax.broadcasted_iota(jnp.int32, (n, n_e), 0)       # [N, E]
    src_oh = (node_ids == src).astype(jnp.bfloat16)               # src_oh[j, e] = (src[e]==j)
    dst_oh = (node_ids == dst).astype(jnp.bfloat16)               # dst_oh[i, e] = (dst[e]==i)
    adj = lax.dot_general(dst_oh, src_oh, (((1,), (1,)), ((), ())),
                          preferred_element_type=jnp.float32)     # [N_dst, N_src]
    row = lax.broadcasted_iota(jnp.int32, (n, n), 0)
    col = lax.broadcasted_iota(jnp.int32, (n, n), 1)
    mask = (adj > 0.0) | (row == col)                             # edges + self loops

    # masked softmax over neighbors j (axis=-1); approx reciprocal on the EUP slot
    e = jnp.where(mask, e, jnp.float32(-1e30))
    p = jnp.exp(e - jnp.max(e, axis=-1, keepdims=True))
    alpha = p * pl.reciprocal(jnp.sum(p, axis=-1, keepdims=True), approx=True)  # [N, N]

    # --- decoder (folded): logits_i = sum_j alpha[i,j] * s_j (VPU mul + lane reduce) ---
    logits = jnp.sum(alpha * s_row, axis=-1, keepdims=True)       # [N, 1]
    lrow = logits.T                                               # [1, N] lane-dense

    # --- softmax over nodes; EXACT divide (output-facing, one vreg, essentially free) ---
    z = jnp.exp(lrow - jnp.max(lrow, axis=-1, keepdims=True))
    probs_ref[0] = z / jnp.sum(z, axis=-1, keepdims=True)


def pointer_net_gnn(x, edge_index, params):
    """x: [B, N, F_in] float32, edge_index: [B, 2, E] int32 (row0=src, row1=dst).

    Returns probs [B, N] (per-graph softmax over nodes).
    """
    B, N, F_in = x.shape
    E = edge_index.shape[-1]
    w, att_src, att_dst, b_gat, w_dec, b_dec = params
    del b_gat, b_dec  # cancel exactly under the final node-softmax (shift invariance)
    H = w.shape[1]

    # One packed [3, H] parameter array: 1 DMA / 1 padded VMEM tile instead of 3.
    att_pack = jnp.concatenate(
        [att_src.reshape(1, H), att_dst.reshape(1, H), w_dec.reshape(1, H)], axis=0)

    probs = pl.pallas_call(
        gat_pointer_kernel,
        out_shape=jax.ShapeDtypeStruct((B, 1, N), jnp.float32),
        grid=(B,),
        in_specs=[
            pl.BlockSpec((1, N, F_in), lambda b: (b, 0, 0)),      # per-graph features
            pl.BlockSpec((F_in, H), lambda b: (0, 0)),            # shared weight (resident)
            pl.BlockSpec((3, H), lambda b: (0, 0)),               # shared packed params
            pl.BlockSpec((1, 2, E), lambda b: (b, 0, 0)),         # per-graph edge_index
        ],
        out_specs=pl.BlockSpec((1, 1, N), lambda b: (b, 0, 0)),
        compiler_params=pltpu.CompilerParams(
            dimension_semantics=("parallel",),                    # shards graphs on v7x's 2 TCs
            vmem_limit_bytes=32 * 1024 * 1024),
    )(x, w, att_pack, edge_index.astype(jnp.int32))
    return probs[:, 0, :]                                         # [B, N]


def _reference_single(x, edge_index, params):
    """Pure-JAX reference of one graph (full semantics, incl. b_gat / b_dec)."""
    N = x.shape[0]
    w, att_src, att_dst, b_gat, w_dec, b_dec = params
    src, dst = edge_index[0], edge_index[1]
    adj = jnp.zeros((N, N), jnp.float32).at[dst, src].set(1.0)
    adj = adj.at[jnp.arange(N), jnp.arange(N)].set(1.0)
    h = x @ w
    a_s = jnp.sum(h * att_src, axis=-1, keepdims=True)
    a_d = jnp.sum(h * att_dst, axis=-1, keepdims=True)
    e = a_d + a_s.T
    e = jnp.where(e > 0, e, NEG_SLOPE * e)
    e = jnp.where(adj > 0, e, -1e30)
    alpha = jax.nn.softmax(e, axis=-1)
    out = alpha @ h + b_gat
    logits = (out @ w_dec + b_dec)[:, 0]
    return jax.nn.softmax(logits, axis=0)


def reference(x, edge_index, params):
    return jax.vmap(lambda xg, eg: _reference_single(xg, eg, params))(x, edge_index)


if __name__ == "__main__":
    B, N, F_IN, H, E = 4, 8, 2, 32, 16  # 4 graphs, 8 nodes, input_dim=2, hidden_dim=32

    key = jax.random.PRNGKey(0)
    k = jax.random.split(key, 8)

    # Deterministic parameter init (shapes follow GATConv(2, H, heads=1) + Linear(H, 1)).
    w = jax.random.normal(k[0], (F_IN, H), jnp.float32) * 0.5        # GAT lin weight
    att_src = jax.random.normal(k[1], (1, H), jnp.float32) * 0.5     # GAT att_src
    att_dst = jax.random.normal(k[2], (1, H), jnp.float32) * 0.5     # GAT att_dst
    b_gat = jax.random.normal(k[3], (1, H), jnp.float32) * 0.1       # GAT bias
    w_dec = jax.random.normal(k[4], (H, 1), jnp.float32) * 0.5       # decoder weight
    b_dec = jax.random.normal(k[5], (1, 1), jnp.float32) * 0.1       # decoder bias
    params = (w, att_src, att_dst, b_gat, w_dec, b_dec)

    # Per-graph node features and random edge sets (duplicates / self-edges are fine:
    # both kernel and reference use set semantics and add self loops).
    x = jax.random.normal(k[6], (B, N, F_IN), jnp.float32)
    edge_index = jax.random.randint(k[7], (B, 2, E), 0, N, dtype=jnp.int32)

    probs = jax.block_until_ready(pointer_net_gnn(x, edge_index, params))
    ref = reference(x, edge_index, params)

    assert probs.shape == (B, N)
    # Final softmax uses an exact divide -> per-graph probabilities sum to 1.
    assert jnp.allclose(jnp.sum(probs, axis=-1), 1.0, atol=1e-4)
    # approx=True reciprocal on the inner alpha normalization + bf16 adjacency matmul
    # (exact for 0/1) keep the result within tight tolerance of the full reference.
    assert jnp.allclose(probs, ref, atol=2e-3, rtol=2e-2), (probs, ref)
    print("KERNEL_OK")
</pallas_src>

<mosaic_0001>
module attributes {stable_mosaic.version = 11 : i64} {
  func.func @gat_pointer_kernel(%arg0: i32, %arg1: memref<1x8x2xf32, #tpu.memory_space<vmem>>, %arg2: memref<2x32xf32, #tpu.memory_space<vmem>>, %arg3: memref<3x32xf32, #tpu.memory_space<vmem>>, %arg4: memref<1x2x16xi32, #tpu.memory_space<vmem>>, %arg5: memref<1x1x8xf32, #tpu.memory_space<vmem>>) attributes {dimension_semantics = [#tpu.dimension_semantics<parallel>], iteration_bounds = array<i64: 4>, scalar_prefetch = 0 : i64, scratch_operands = 0 : i64, tpu.core_type = #tpu.core_type<tc>, window_params = [{transform_indices = @transform_0, window_bounds = array<i64: 1, 8, 2>}, {pipeline_mode = #tpu.pipeline_mode<synchronous>, transform_indices = @transform_1, window_bounds = array<i64: 2, 32>}, {pipeline_mode = #tpu.pipeline_mode<synchronous>, transform_indices = @transform_2, window_bounds = array<i64: 3, 32>}, {transform_indices = @transform_3, window_bounds = array<i64: 1, 2, 16>}, {transform_indices = @transform_4, window_bounds = array<i64: 1, 1, 8>}]} {
    %c0 = arith.constant 0 : index
    %c0_0 = arith.constant 0 : index
    %c0_1 = arith.constant 0 : index
    %0 = vector.load %arg1[%c0, %c0_0, %c0_1] : memref<1x8x2xf32, #tpu.memory_space<vmem>>, vector<1x8x2xf32>
    %1 = vector.shape_cast %0 : vector<1x8x2xf32> to vector<8x2xf32>
    %c0_2 = arith.constant 0 : index
    %c0_3 = arith.constant 0 : index
    %2 = vector.load %arg2[%c0_2, %c0_3] : memref<2x32xf32, #tpu.memory_space<vmem>>, vector<2x32xf32>
    %c0_4 = arith.constant 0 : index
    %c0_5 = arith.constant 0 : index
    %3 = vector.load %arg3[%c0_4, %c0_5] : memref<3x32xf32, #tpu.memory_space<vmem>>, vector<1x32xf32>
    %c1 = arith.constant 1 : index
    %c0_6 = arith.constant 0 : index
    %4 = vector.load %arg3[%c1, %c0_6] : memref<3x32xf32, #tpu.memory_space<vmem>>, vector<1x32xf32>
    %c2 = arith.constant 2 : index
    %c0_7 = arith.constant 0 : index
    %5 = vector.load %arg3[%c2, %c0_7] : memref<3x32xf32, #tpu.memory_space<vmem>>, vector<1x32xf32>
    %6 = vector.extract_strided_slice %1 {offsets = [0, 0], sizes = [8, 1], strides = [1, 1]} : vector<8x2xf32> to vector<8x1xf32>
    %7 = vector.extract_strided_slice %2 {offsets = [0, 0], sizes = [1, 32], strides = [1, 1]} : vector<2x32xf32> to vector<1x32xf32>
    %8 = vector.broadcast %6 : vector<8x1xf32> to vector<8x32xf32>
    %9 = vector.broadcast %7 : vector<1x32xf32> to vector<8x32xf32>
    %10 = arith.mulf %8, %9 : vector<8x32xf32>
    %11 = vector.extract_strided_slice %1 {offsets = [0, 1], sizes = [8, 1], strides = [1, 1]} : vector<8x2xf32> to vector<8x1xf32>
    %12 = vector.extract_strided_slice %2 {offsets = [1, 0], sizes = [1, 32], strides = [1, 1]} : vector<2x32xf32> to vector<1x32xf32>
    %13 = vector.broadcast %11 : vector<8x1xf32> to vector<8x32xf32>
    %14 = vector.broadcast %12 : vector<1x32xf32> to vector<8x32xf32>
    %15 = arith.mulf %13, %14 : vector<8x32xf32>
    %16 = arith.addf %10, %15 : vector<8x32xf32>
    %17 = vector.broadcast %3 : vector<1x32xf32> to vector<8x32xf32>
    %18 = arith.mulf %16, %17 : vector<8x32xf32>
    %cst = arith.constant dense<0.000000e+00> : vector<8xf32>
    %19 = vector.multi_reduction <add>, %18, %cst [1] : vector<8x32xf32> to vector<8xf32>
    %20 = vector.shape_cast %19 : vector<8xf32> to vector<8x1xf32>
    %21 = vector.broadcast %4 : vector<1x32xf32> to vector<8x32xf32>
    %22 = arith.mulf %16, %21 : vector<8x32xf32>
    %cst_8 = arith.constant dense<0.000000e+00> : vector<8xf32>
    %23 = vector.multi_reduction <add>, %22, %cst_8 [1] : vector<8x32xf32> to vector<8xf32>
    %24 = vector.shape_cast %23 : vector<8xf32> to vector<8x1xf32>
    %25 = vector.broadcast %5 : vector<1x32xf32> to vector<8x32xf32>
    %26 = arith.mulf %16, %25 : vector<8x32xf32>
    %cst_9 = arith.constant dense<0.000000e+00> : vector<8xf32>
    %27 = vector.multi_reduction <add>, %26, %cst_9 [1] : vector<8x32xf32> to vector<8xf32>
    %28 = vector.shape_cast %27 : vector<8xf32> to vector<8x1xf32>
    %29 = tpu.transpose %20, [1, 0] : vector<8x1xf32> -> vector<1x8xf32>
    %30 = tpu.transpose %28, [1, 0] : vector<8x1xf32> -> vector<1x8xf32>
    %31 = vector.broadcast %24 : vector<8x1xf32> to vector<8x8xf32>
    %32 = vector.broadcast %29 : vector<1x8xf32> to vector<8x8xf32>
    %33 = arith.addf %31, %32 : vector<8x8xf32>
    %cst_10 = arith.constant 0.000000e+00 : f32
    %34 = vector.broadcast %cst_10 : f32 to vector<8x8xf32>
    %35 = arith.cmpf ogt, %33, %34 : vector<8x8xf32>
    %cst_11 = arith.constant 2.000000e-01 : f32
    %36 = vector.broadcast %cst_11 : f32 to vector<8x8xf32>
    %37 = arith.mulf %36, %33 : vector<8x8xf32>
    %38 = arith.select %35, %33, %37 : vector<8x8xi1>, vector<8x8xf32>
    %c0_12 = arith.constant 0 : index
    %c0_13 = arith.constant 0 : index
    %c0_14 = arith.constant 0 : index
    %39 = vector.load %arg4[%c0_12, %c0_13, %c0_14] : memref<1x2x16xi32, #tpu.memory_space<vmem>>, vector<1x2x16xi32>
    %40 = vector.shape_cast %39 : vector<1x2x16xi32> to vector<2x16xi32>
    %41 = vector.extract_strided_slice %40 {offsets = [0, 0], sizes = [1, 16], strides = [1, 1]} : vector<2x16xi32> to vector<1x16xi32>
    %42 = vector.extract_strided_slice %40 {offsets = [1, 0], sizes = [1, 16], strides = [1, 1]} : vector<2x16xi32> to vector<1x16xi32>
    %43 = tpu.iota {dimensions = array<i32: 0>} : vector<8x16xi32>
    %44 = vector.broadcast %41 : vector<1x16xi32> to vector<8x16xi32>
    %45 = arith.cmpi eq, %43, %44 : vector<8x16xi32>
    %46 = arith.extui %45 : vector<8x16xi1> to vector<8x16xi32>
    %47 = arith.sitofp %46 : vector<8x16xi32> to vector<8x16xf32>
    %48 = arith.truncf %47 : vector<8x16xf32> to vector<8x16xbf16>
    %49 = vector.broadcast %42 : vector<1x16xi32> to vector<8x16xi32>
    %50 = arith.cmpi eq, %43, %49 : vector<8x16xi32>
    %51 = arith.extui %50 : vector<8x16xi1> to vector<8x16xi32>
    %52 = arith.sitofp %51 : vector<8x16xi32> to vector<8x16xf32>
    %53 = arith.truncf %52 : vector<8x16xf32> to vector<8x16xbf16>
    %cst_15 = arith.constant dense<0.000000e+00> : vector<8x8xf32>
    %54 = tpu.matmul %53, %48, %cst_15 {dimension_numbers = #tpu.dot_dimension_numbers<[1], [1], [0], [0], [0, 0, 1, 0], [], []>} : vector<8x16xbf16>, vector<8x16xbf16>, vector<8x8xf32> -> vector<8x8xf32>
    %55 = tpu.iota {dimensions = array<i32: 0>} : vector<8x8xi32>
    %56 = tpu.iota {dimensions = array<i32: 1>} : vector<8x8xi32>
    %cst_16 = arith.constant 0.000000e+00 : f32
    %57 = vector.broadcast %cst_16 : f32 to vector<8x8xf32>
    %58 = arith.cmpf ogt, %54, %57 : vector<8x8xf32>
    %59 = arith.cmpi eq, %55, %56 : vector<8x8xi32>
    %60 = arith.ori %58, %59 : vector<8x8xi1>
    %cst_17 = arith.constant -1.000000e+30 : f32
    %61 = vector.broadcast %cst_17 : f32 to vector<8x8xf32>
    %62 = arith.select %60, %38, %61 : vector<8x8xi1>, vector<8x8xf32>
    %cst_18 = arith.constant dense<0xFF800000> : vector<8xf32>
    %63 = vector.multi_reduction <maximumf>, %62, %cst_18 [1] : vector<8x8xf32> to vector<8xf32>
    %64 = vector.shape_cast %63 : vector<8xf32> to vector<8x1xf32>
    %65 = vector.broadcast %64 : vector<8x1xf32> to vector<8x8xf32>
    %66 = arith.subf %62, %65 : vector<8x8xf32>
    %67 = math.exp %66 : vector<8x8xf32>
    %cst_19 = arith.constant dense<0.000000e+00> : vector<8xf32>
    %68 = vector.multi_reduction <add>, %67, %cst_19 [1] : vector<8x8xf32> to vector<8xf32>
    %69 = vector.shape_cast %68 : vector<8xf32> to vector<8x1xf32>
    %70 = tpu.reciprocal %69 {approx = true} : vector<8x1xf32> -> vector<8x1xf32>
    %71 = vector.broadcast %70 : vector<8x1xf32> to vector<8x8xf32>
    %72 = arith.mulf %67, %71 : vector<8x8xf32>
    %73 = vector.broadcast %30 : vector<1x8xf32> to vector<8x8xf32>
    %74 = arith.mulf %72, %73 : vector<8x8xf32>
    %cst_20 = arith.constant dense<0.000000e+00> : vector<8xf32>
    %75 = vector.multi_reduction <add>, %74, %cst_20 [1] : vector<8x8xf32> to vector<8xf32>
    %76 = vector.shape_cast %75 : vector<8xf32> to vector<8x1xf32>
    %77 = tpu.transpose %76, [1, 0] : vector<8x1xf32> -> vector<1x8xf32>
    %cst_21 = arith.constant dense<0xFF800000> : vector<1xf32>
    %78 = vector.multi_reduction <maximumf>, %77, %cst_21 [1] : vector<1x8xf32> to vector<1xf32>
    %79 = vector.shape_cast %78 : vector<1xf32> to vector<1x1xf32>
    %80 = vector.broadcast %79 : vector<1x1xf32> to vector<1x8xf32>
    %81 = arith.subf %77, %80 : vector<1x8xf32>
    %82 = math.exp %81 : vector<1x8xf32>
    %cst_22 = arith.constant dense<0.000000e+00> : vector<1xf32>
    %83 = vector.multi_reduction <add>, %82, %cst_22 [1] : vector<1x8xf32> to vector<1xf32>
    %84 = vector.shape_cast %83 : vector<1xf32> to vector<1x1xf32>
    %85 = vector.broadcast %84 : vector<1x1xf32> to vector<1x8xf32>
    %86 = arith.divf %82, %85 : vector<1x8xf32>
    %c0_23 = arith.constant 0 : index
    %c0_24 = arith.constant 0 : index
    %c0_25 = arith.constant 0 : index
    %87 = vector.load %arg5[%c0_23, %c0_24, %c0_25] : memref<1x1x8xf32, #tpu.memory_space<vmem>>, vector<1x1x8xf32>
    %88 = vector.shape_cast %87 : vector<1x1x8xf32> to vector<1x8xf32>
    %89 = vector.shape_cast %86 : vector<1x8xf32> to vector<1x1x8xf32>
    tpu.vector_store %arg5[%c0_23, %c0_24, %c0_25], %89 {strides = array<i32>} : memref<1x1x8xf32, #tpu.memory_space<vmem>>, vector<1x1x8xf32>,
    return
  }
  func.func @transform_0(%arg0: i32) -> (i32, i32, i32) {
    %c0_i32 = arith.constant 0 : i32
    %c0_i32_0 = arith.constant 0 : i32
    %c0_i32_1 = arith.constant 0 : i32
    return %arg0, %c0_i32, %c0_i32_0 : i32, i32, i32
  }
  func.func @transform_1(%arg0: i32) -> (i32, i32) {
    %c0_i32 = arith.constant 0 : i32
    %c0_i32_0 = arith.constant 0 : i32
    %c0_i32_1 = arith.constant 0 : i32
    return %c0_i32, %c0_i32_0 : i32, i32
  }
  func.func @transform_2(%arg0: i32) -> (i32, i32) {
    %c0_i32 = arith.constant 0 : i32
    %c0_i32_0 = arith.constant 0 : i32
    %c0_i32_1 = arith.constant 0 : i32
    return %c0_i32, %c0_i32_0 : i32, i32
  }
  func.func @transform_3(%arg0: i32) -> (i32, i32, i32) {
    %c0_i32 = arith.constant 0 : i32
    %c0_i32_0 = arith.constant 0 : i32
    %c0_i32_1 = arith.constant 0 : i32
    return %arg0, %c0_i32, %c0_i32_0 : i32, i32, i32
  }
  func.func @transform_4(%arg0: i32) -> (i32, i32, i32) {
    %c0_i32 = arith.constant 0 : i32
    %c0_i32_0 = arith.constant 0 : i32
    %c0_i32_1 = arith.constant 0 : i32
    return %arg0, %c0_i32, %c0_i32_0 : i32, i32, i32
  }
}

</mosaic_0001>

<llo_original>
// kernel: tpu_custom_call.1
$region0: #{tpu_custom_call.1}
  #allocation0 [shape = 'u32[]', space=smem, size = 0x4, offset = 0x4, fixed_abs, tag = 'smem constant byte address 0x4 - core index']
  #allocation1 [shape = 'u32[144,128]{1,0:T(1,128)}', space=vmem, size = 0x12000, scoped, tag = 'internal scratch']
  %s0 = inlined_call_operand.vmem [shape: f32[4,8,2], index: 0, kind: input, shape index: {}]
  %s1 = inlined_call_operand.vmem [shape: f32[2,32], index: 1, kind: input, shape index: {}]
  %s2 = inlined_call_operand.vmem [shape: f32[3,32], index: 2, kind: input, shape index: {}]
  %s3 = inlined_call_operand.vmem [shape: s32[4,2,16], index: 3, kind: input, shape index: {}]
  %s4 = inlined_call_operand.hbm [shape: f32[4,1,8], index: 4, kind: output, shape index: {}]
  %s5 = sld [smem:[#allocation0]]
  $region49: #{tpu_custom_call.1} parent=0
    _
  %s7 = ssub.s32 1, %s5
  %s8 = scalar_select 0, %s7, %s5
  $region1: #{tpu_custom_call.1} parent=0
    #allocation2 [shape = 'u8[1024]{0}', space=vmem, size = 0x400, scoped, tag = 'output window, operand 0']
    #allocation3 [shape = 's32[2]{0}', space=sflag, size = 0x8, scoped, tag = 'scoped memory for tpu_custom_call.1']
    %9 = vsyncpa [#allocation3], 0
    %s10 = scalar_lea.sflag [#allocation3], 1
    %11 = vsyncpa %s10, 0
    loop: start=0, step=1, limit=6
    $region2: #{tpu_custom_call.1} parent=1 // loop_pre_header
      _
    $region3: #{tpu_custom_call.1} parent=1 // loop_header
      %s13 = sphi 0, %s17
      %p14 = scmp.ge.s32.totalorder %s13, 6
      %s23 = sphi 0, %s25
      %s26 = sphi 0, %s23
      %s27 = sphi 0, %s26
      %s43 = sphi 0, %s27
      %s47 = sphi 0, %s47
      %s49 = sphi 0, %s47
      %s50 = sphi 0, %s49
      %s64 = sphi 0, %s50
      %s68 = sphi 0, %s68
      %s70 = sphi 0, %s68
      %s71 = sphi 0, %s70
      %s85 = sphi 0, %s71
      %s91 = sphi 0, %s93
      %s94 = sphi 0, %s91
      %s95 = sphi 0, %s94
      %s111 = sphi 0, %s95
      %s117 = sphi 0, %s119
      %s120 = sphi 0, %s117
      %s121 = sphi 0, %s120
      %s137 = sphi 0, %s121
    $region4: #{tpu_custom_call.1} parent=1 // loop_header_branch
      %16 = sbr.rel (%p14) target = $region8
    $region5: #{tpu_custom_call.1} parent=1 // loop_body
      %s18 = ssub.s32 %s13, 1
      %s19 = ssub.s32 %s13, 2
      %s20 = sadd.s32 %s13, 1
      %s21 = ssub.s32 %s13, %s20
      %p22 = scmp.eq.s32.totalorder %s21, 0
      %s24 = sadd.s32 %s23, 1
      %s25 = scalar_select %p22, %s23, %s24
      %p28 = pneg %p22
      %p29 = scmp.eq.s32.totalorder %s13, 3
      %p30 = por %p28, %p29
      %p31 = scmp.ne.s32.totalorder %s23, %s26
      %p32 = scmp.eq.s32.totalorder %s13, 0
      %p33 = por %p31, %p32
      %p34 = scmp.ne.s32.totalorder %s23, %s26
      %p35 = scmp.eq.s32.totalorder %s18, 3
      %p36 = por %p34, %p35
      %p37 = scmp.ne.s32.totalorder %s26, %s27
      %p38 = scmp.eq.s32.totalorder %s18, 0
      %p39 = por %p37, %p38
      %p40 = scmp.ne.s32.totalorder %s26, %s27
      %p41 = scmp.eq.s32.totalorder %s19, 3
      %p42 = por %p40, %p41
      %p44 = scmp.ne.s32.totalorder %s27, %s43
      %p45 = scmp.eq.s32.totalorder %s19, 0
      %p46 = por %p44, %p45
      %s48 = sadd.s32 %s47, 1
      %p51 = scmp.eq.s32.totalorder %s13, 3
      %p52 = scmp.ne.s32.totalorder %s47, %s49
      %p53 = scmp.eq.s32.totalorder %s13, 0
      %p54 = por %p52, %p53
      %p55 = scmp.ne.s32.totalorder %s47, %s49
      %p56 = scmp.eq.s32.totalorder %s18, 3
      %p57 = por %p55, %p56
      %p58 = scmp.ne.s32.totalorder %s49, %s50
      %p59 = scmp.eq.s32.totalorder %s18, 0
      %p60 = por %p58, %p59
      %p61 = scmp.ne.s32.totalorder %s49, %s50
      %p62 = scmp.eq.s32.totalorder %s19, 3
      %p63 = por %p61, %p62
      %p65 = scmp.ne.s32.totalorder %s50, %s64
      %p66 = scmp.eq.s32.totalorder %s19, 0
      %p67 = por %p65, %p66
      %s69 = sadd.s32 %s68, 1
      %p72 = scmp.eq.s32.totalorder %s13, 3
      %p73 = scmp.ne.s32.totalorder %s68, %s70
      %p74 = scmp.eq.s32.totalorder %s13, 0
      %p75 = por %p73, %p74
      %p76 = scmp.ne.s32.totalorder %s68, %s70
      %p77 = scmp.eq.s32.totalorder %s18, 3
      %p78 = por %p76, %p77
      %p79 = scmp.ne.s32.totalorder %s70, %s71
      %p80 = scmp.eq.s32.totalorder %s18, 0
      %p81 = por %p79, %p80
      %p82 = scmp.ne.s32.totalorder %s70, %s71
      %p83 = scmp.eq.s32.totalorder %s19, 3
      %p84 = por %p82, %p83
      %p86 = scmp.ne.s32.totalorder %s71, %s85
      %p87 = scmp.eq.s32.totalorder %s19, 0
      %p88 = por %p86, %p87
      %s89 = ssub.s32 %s13, %s20
      %p90 = scmp.eq.s32.totalorder %s89, 0
      %s92 = sadd.s32 %s91, 1
      %s93 = scalar_select %p90, %s91, %s92
      %p96 = pneg %p90
      %p97 = scmp.eq.s32.totalorder %s13, 3
      %p98 = por %p96, %p97
      %p99 = scmp.ne.s32.totalorder %s91, %s94
      %p100 = scmp.eq.s32.totalorder %s13, 0
      %p101 = por %p99, %p100
      %p102 = scmp.ne.s32.totalorder %s91, %s94
      %p103 = scmp.eq.s32.totalorder %s18, 3
      %p104 = por %p102, %p103
      %p105 = scmp.ne.s32.totalorder %s94, %s95
      %p106 = scmp.eq.s32.totalorder %s18, 0
      %p107 = por %p105, %p106
      %p108 = scmp.ne.s32.totalorder %s94, %s95
      %p109 = scmp.eq.s32.totalorder %s19, 3
      %p110 = por %p108, %p109
      %p112 = scmp.ne.s32.totalorder %s95, %s111
      %p113 = scmp.eq.s32.totalorder %s19, 0
      %p114 = por %p112, %p113
      %s115 = ssub.s32 %s13, %s20
      %p116 = scmp.eq.s32.totalorder %s115, 0
      %s118 = sadd.s32 %s117, 1
      %s119 = scalar_select %p116, %s117, %s118
      %p122 = pneg %p116
      %p123 = scmp.eq.s32.totalorder %s13, 3
      %p124 = por %p122, %p123
      %p125 = scmp.ne.s32.totalorder %s117, %s120
      %p126 = scmp.eq.s32.totalorder %s13, 0
      %p127 = por %p125, %p126
      %p128 = scmp.ne.s32.totalorder %s117, %s120
      %p129 = scmp.eq.s32.totalorder %s18, 3
      %p130 = por %p128, %p129
      %p131 = scmp.ne.s32.totalorder %s120, %s121
      %p132 = scmp.eq.s32.totalorder %s18, 0
      %p133 = por %p131, %p132
      %p134 = scmp.ne.s32.totalorder %s120, %s121
      %p135 = scmp.eq.s32.totalorder %s19, 3
      %p136 = por %p134, %p135
      %p138 = scmp.ne.s32.totalorder %s121, %s137
      %p139 = scmp.eq.s32.totalorder %s19, 0
      %p140 = por %p138, %p139
      %p141 = scmp.le.s32.totalorder 1, %s13
      %p142 = scmp.lt.s32.totalorder %s13, 5
      %p143 = pnand %p141, %p142
      %p144 = pneg %p143
      // Predicated region
      $region9: #{tpu_custom_call.1} parent=5 // pred_check
        _
      $region10: #{tpu_custom_call.1} parent=5 // pred_check_branch
        %146 = sbr.rel (%p143) target = $region12
      $region11: #{tpu_custom_call.1} parent=5 // pred_region
        %s147 = ssub.s32 %s13, 1
        // Predicated region
        $region13: #{tpu_custom_call.1} parent=11 // pred_check
          %p148 = pneg %p60
        $region14: #{tpu_custom_call.1} parent=11 // pred_check_branch
          %150 = sbr.rel (%p148) target = $region16
        $region15: #{tpu_custom_call.1} parent=11 // pred_region
          _
        $region16: #{tpu_custom_call.1} parent=11 // pred_fallthru
          _
        // Predicated region
        $region17: #{tpu_custom_call.1} parent=11 // pred_check
          %p151 = pneg %p81
        $region18: #{tpu_custom_call.1} parent=11 // pred_check_branch
          %153 = sbr.rel (%p151) target = $region20
        $region19: #{tpu_custom_call.1} parent=11 // pred_region
          _
        $region20: #{tpu_custom_call.1} parent=11 // pred_fallthru
          _
      $region12: #{tpu_custom_call.1} parent=5 // pred_fallthru
        _
      %p154 = scmp.lt.s32.totalorder %s13, 4
      // Predicated region
      $region21: #{tpu_custom_call.1} parent=5 // pred_check
        %p155 = pneg %p154
      $region22: #{tpu_custom_call.1} parent=5 // pred_check_branch
        %157 = sbr.rel (%p155) target = $region24
      $region23: #{tpu_custom_call.1} parent=5 // pred_region
        // Predicated region
        $region25: #{tpu_custom_call.1} parent=23 // pred_check
          %p158 = pneg %p33
        $region26: #{tpu_custom_call.1} parent=23 // pred_check_branch
          %160 = sbr.rel (%p158) target = $region28
        $region27: #{tpu_custom_call.1} parent=23 // pred_region
          %p161 = scmp.lt.s32.totalorder %s13, 3
          %s162 = scalar_select %p161, %s13, 3
          %s163 = smul.addr %s162, 8
          %s164 = scalar_lea.vmem %s0, %s163
        $region28: #{tpu_custom_call.1} parent=23 // pred_fallthru
          _
        // Predicated region
        $region29: #{tpu_custom_call.1} parent=23 // pred_check
          %p165 = pneg %p101
        $region30: #{tpu_custom_call.1} parent=23 // pred_check_branch
          %167 = sbr.rel (%p165) target = $region32
        $region31: #{tpu_custom_call.1} parent=23 // pred_region
          %p168 = scmp.lt.s32.totalorder %s13, 3
          %s169 = scalar_select %p168, %s13, 3
          %s170 = smul.addr %s169, 2
          %s171 = scalar_lea.vmem %s3, %s170
        $region32: #{tpu_custom_call.1} parent=23 // pred_fallthru
          _
      $region24: #{tpu_custom_call.1} parent=5 // pred_fallthru
        _
      %p172 = scmp.le.s32.totalorder 1, %s13
      %p173 = scmp.lt.s32.totalorder %s13, 5
      %p174 = pnand %p172, %p173
      %p175 = pneg %p174
      // Predicated region
      $region33: #{tpu_custom_call.1} parent=5 // pred_check
        _
      $region34: #{tpu_custom_call.1} parent=5 // pred_check_branch
        %177 = sbr.rel (%p174) target = $region36
      $region35: #{tpu_custom_call.1} parent=5 // pred_region
        %s178 = ssub.s32 %s13, 1
        %p179 = scmp.lt.s32.totalorder %s18, 3
        %s180 = scalar_select %p179, %s18, 3
        %s181 = smul.addr %s180, 8
        %s182 = scalar_lea.vmem %s0, %s181
        %p183 = pneg %p39
        %p184 = pneg %p36
        %p185 = pneg %p60
        %p186 = pneg %p57
        %p187 = pneg %p81
        %p188 = pneg %p78
        %p189 = scmp.lt.s32.totalorder %s18, 3
        %s190 = scalar_select %p189, %s18, 3
        %s191 = smul.addr %s190, 2
        %s192 = scalar_lea.vmem %s3, %s191
        %p193 = pneg %p107
        %p194 = pneg %p104
        %p195 = pneg %p133
        %p196 = pneg %p130
        %s197 = sand.u32 %s120, 1
        %s198 = scalar_lea.sflag [#allocation3], %s197
        %s199 = sand.u32 %s120, 1
        %s200 = scalar_lea.vmem [#allocation2], %s199
        %p201 = scmp.lt.s32.totalorder %s18, 3
        %s202 = scalar_select %p201, %s18, 3
        %s203 = smul.addr %s202, 8
        %s204 = scalar_lea.vmem %s0, %s203
        %p205 = scmp.lt.s32.totalorder %s18, 3
        %s206 = scalar_select %p205, %s18, 3
        %s207 = smul.addr %s206, 2
        %s208 = scalar_lea.vmem %s3, %s207
        %v210 = vld [vmem:[%s204] sm:$0xff]
        %v211 = vld [vmem:[%s1] sm:$0x3]
        %v212 = vld [vmem:[%s2] sm:$0x1]
        %v213 = vld [vmem:[%s2 + $0x1] sm:$0x1]
        %v214 = vld [vmem:[%s2 + $0x2] sm:$0x1]
        %216 = vset.pattern.permute.xlu0 0
        %217 = vperm.xlu0 %216, %v210
        %v218 = vpop.permute.xlu0 %217
        %v220 = vlaneseq
        %v221 = vshrl.u32 %v220, 7
        %v222 = vsub.s32 0, %v221
        %v223 = vrot.slane %v211, %v222
        %v224 = vmul.f32 %v218, %v223
        %225 = vset.pattern.permute.xlu0 1
        %226 = vperm.xlu0 %225, %v210
        %v227 = vpop.permute.xlu0 %226
        %v229 = vlaneseq
        %v230 = vshrl.u32 %v229, 7
        %v231 = vsub.s32 1, %v230
        %v232 = vrot.slane %v211, %v231
        %v233 = vmul.f32 %v227, %v232
        %v234 = vadd.f32 %v224, %v233
        %v235 = vlaneseq
        %v236 = vshrl.u32 %v235, 7
        %v237 = vsub.s32 0, %v236
        %v238 = vrot.slane %v212, %v237
        %v239 = vmul.f32 %v234, %v238
        %vm240 = vcmask 261120
        %v241 = vsel %vm240, %v239, 0.0
        %242 = vadd.xlane.f32.xlu0 %v241
        %v243 = vpop.xlane.xlu0 %242
        %v244 = vlaneseq
        %v245 = vshrl.u32 %v244, 7
        %v246 = vsub.s32 0, %v245
        %v247 = vrot.slane %v213, %v246
        %v248 = vmul.f32 %v234, %v247
        %v249 = vsel %vm240, %v248, 0.0
        %250 = vadd.xlane.f32.xlu0 %v249
        %v251 = vpop.xlane.xlu0 %250
        %v252 = vlaneseq
        %v253 = vshrl.u32 %v252, 7
        %v254 = vsub.s32 0, %v253
        %v255 = vrot.slane %v214, %v254
        %v256 = vmul.f32 %v234, %v255
        %v257 = vsel %vm240, %v256, 0.0
        %258 = vadd.xlane.f32.xlu0 %v257
        %v259 = vpop.xlane.xlu0 %258
        %260 = vxpose.xlu0.b32.start [1/16] %v243, 128
        %261 = vxpose.xlu0.b32.cont [2/16] 0.0, 128
        %262 = vxpose.xlu0.b32.cont [3/16] 0.0, 128
        %263 = vxpose.xlu0.b32.cont [4/16] 0.0, 128
        %264 = vxpose.xlu0.b32.cont [5/16] 0.0, 128
        %265 = vxpose.xlu0.b32.cont [6/16] 0.0, 128
        %266 = vxpose.xlu0.b32.cont [7/16] 0.0, 128
        %267 = vxpose.xlu0.b32.cont [8/16] 0.0, 128
        %268 = vxpose.xlu0.b32.cont [9/16] 0.0, 128
        %269 = vxpose.xlu0.b32.cont [10/16] 0.0, 128
        %270 = vxpose.xlu0.b32.cont [11/16] 0.0, 128
        %271 = vxpose.xlu0.b32.cont [12/16] 0.0, 128
        %272 = vxpose.xlu0.b32.cont [13/16] 0.0, 128
        %273 = vxpose.xlu0.b32.cont [14/16] 0.0, 128
        %274 = vxpose.xlu0.b32.cont [15/16] 0.0, 128
        %275 = vxpose.xlu0.b32.end [16/16] 0.0, 128
        %v276 = vpop.trf.xlu0
        %v277 = vpop.trf.xlu0
        %v278 = vpop.trf.xlu0
        %v279 = vpop.trf.xlu0
        %v280 = vpop.trf.xlu0
        %v281 = vpop.trf.xlu0
        %v282 = vpop.trf.xlu0
        %v283 = vpop.trf.xlu0
        %v284 = vpop.trf.xlu0
        %v285 = vpop.trf.xlu0
        %v286 = vpop.trf.xlu0
        %v287 = vpop.trf.xlu0
        %v288 = vpop.trf.xlu0
        %v289 = vpop.trf.xlu0
        %v290 = vpop.trf.xlu0
        %v291 = vpop.trf.xlu0
        %292 = vxpose.xlu0.b32.start [1/16] %v259, 128
        %293 = vxpose.xlu0.b32.cont [2/16] 0.0, 128
        %294 = vxpose.xlu0.b32.cont [3/16] 0.0, 128
        %295 = vxpose.xlu0.b32.cont [4/16] 0.0, 128
        %296 = vxpose.xlu0.b32.cont [5/16] 0.0, 128
        %297 = vxpose.xlu0.b32.cont [6/16] 0.0, 128
        %298 = vxpose.xlu0.b32.cont [7/16] 0.0, 128
        %299 = vxpose.xlu0.b32.cont [8/16] 0.0, 128
        %300 = vxpose.xlu0.b32.cont [9/16] 0.0, 128
        %301 = vxpose.xlu0.b32.cont [10/16] 0.0, 128
        %302 = vxpose.xlu0.b32.cont [11/16] 0.0, 128
        %303 = vxpose.xlu0.b32.cont [12/16] 0.0, 128
        %304 = vxpose.xlu0.b32.cont [13/16] 0.0, 128
        %305 = vxpose.xlu0.b32.cont [14/16] 0.0, 128
        %306 = vxpose.xlu0.b32.cont [15/16] 0.0, 128
        %307 = vxpose.xlu0.b32.end [16/16] 0.0, 128
        %v308 = vpop.trf.xlu0
        %v309 = vpop.trf.xlu0
        %v310 = vpop.trf.xlu0
        %v311 = vpop.trf.xlu0
        %v312 = vpop.trf.xlu0
        %v313 = vpop.trf.xlu0
        %v314 = vpop.trf.xlu0
        %v315 = vpop.trf.xlu0
        %v316 = vpop.trf.xlu0
        %v317 = vpop.trf.xlu0
        %v318 = vpop.trf.xlu0
        %v319 = vpop.trf.xlu0
        %v320 = vpop.trf.xlu0
        %v321 = vpop.trf.xlu0
        %v322 = vpop.trf.xlu0
        %v323 = vpop.trf.xlu0
        %v324 = vlaneseq
        %v325 = vshrl.u32 %v324, 7
        %v326 = vsub.s32 0, %v325
        %v327 = vrot.slane %v276, %v326
        %v328 = vadd.f32 %v251, %v327
        %vm329 = vcmp.gt.f32.partialorder %v328, 0.0
        %v330 = vmul.f32 %v328, 0.2
        %v331 = vsel %vm329, %v328, %v330
        %v332 = vld [vmem:[%s208] sm:$0x3]
        %v333 = vlaneseq
        %v334 = vshrl.u32 %v333, 7
        %v335 = vlaneseq
        %v336 = vshrl.u32 %v335, 7
        %v337 = vsub.s32 0, %v336
        %v338 = vrot.slane %v332, %v337
        %vm339 = vcmp.eq.s32.totalorder %v334, %v338
        %v340 = vsel %vm339, 1, 0
        %v341 = vcvt.s32.f32 %v340
        %v342 = vpack.c.bf16 %v341, %v341
        %v343 = vlaneseq
        %v344 = vshrl.u32 %v343, 7
        %v345 = vsub.s32 1, %v344
        %v346 = vrot.slane %v332, %v345
        %vm347 = vcmp.eq.s32.totalorder %v334, %v346
        %v348 = vsel %vm347, 1, 0
        %v349 = vcvt.s32.f32 %v348
        %v350 = vpack.c.bf16 %v349, %v349
        %vm351 = vcmask 130048
        %v353 = vsel %vm351, %v350, 0
        %v356 = vsel %vm351, %v342, 0
        %358 = vmatprep.subr.bf16.mxu0 0
        %359 = vmatpush1.bf16.xpose.msra.mxu0 %v356
        %360 = vmatprep.subr.bf16.mxu0 0
        %361 = vmatpush1.bf16.xpose.msra.mxu0 0
        %362 = vmatprep.subr.bf16.mxu0 0
        %363 = vmatpush1.bf16.xpose.msra.mxu0 0
        %364 = vmatprep.subr.bf16.mxu0 0
        %365 = vmatpush1.bf16.xpose.msra.mxu0 0
        %366 = vmatprep.subr.bf16.mxu0 0
        %367 = vmatpush1.bf16.xpose.msra.mxu0 0
        %368 = vmatprep.subr.bf16.mxu0 0
        %369 = vmatpush1.bf16.xpose.msra.mxu0 0
        %370 = vmatprep.subr.bf16.mxu0 0
        %371 = vmatpush1.bf16.xpose.msra.mxu0 0
        %372 = vmatprep.subr.bf16.mxu0 0
        %373 = vmatpush1.bf16.xpose.msra.mxu0 0
        %374 = vmatprep.subr.bf16.mxu0 0
        %375 = vmatpush1.bf16.xpose.msra.mxu0 0
        %376 = vmatprep.subr.bf16.mxu0 0
        %377 = vmatpush1.bf16.xpose.msra.mxu0 0
        %378 = vmatprep.subr.bf16.mxu0 0
        %379 = vmatpush1.bf16.xpose.msra.mxu0 0
        %380 = vmatprep.subr.bf16.mxu0 0
        %381 = vmatpush1.bf16.xpose.msra.mxu0 0
        %382 = vmatprep.subr.bf16.mxu0 0
        %383 = vmatpush1.bf16.xpose.msra.mxu0 0
        %384 = vmatprep.subr.bf16.mxu0 0
        %385 = vmatpush1.bf16.xpose.msra.mxu0 0
        %386 = vmatprep.subr.bf16.mxu0 0
        %387 = vmatpush1.bf16.xpose.msra.mxu0 0
        %388 = vmatprep.subr.bf16.mxu0 0
        %389 = vmatpush1.bf16.xpose.msra.mxu0 0
        %390 = vmatprep.mubr.bf16.mxu0 0
        %391 = vmatmul.mubr.bf16.gmra.mrb[0].mxu0 %v353
        %v392 = vpop.f32.mrb[0].mxu0
        %v393 = vadd.f32 0.0, %v392
        %v394 = vpop.f32.mrb[0].mxu0
        %v395 = vpop.f32.mrb[0].mxu0
        %v396 = vpop.f32.mrb[0].mxu0
        %397 = vdwg.mxu0
        %v398 = vlaneseq
        %v399 = vand.u32 %v398, 127
        %vm400 = vcmp.gt.f32.partialorder %v393, 0.0
        %vm401 = vcmp.eq.s32.totalorder %v334, %v399
        %vm402 = vmor %vm400, %vm401
        %v403 = vsel %vm402, %v331, -1e+30
        %vm404 = vcmask 64512
        %v405 = vsel %vm404, %v403, -inf
        %406 = vmax.xlane.f32.xlu0 %v405
        %v407 = vpop.xlane.xlu0 %406
        %v408 = vsub.f32 %v403, %v407
        %v409 = vmul.f32 %v408, 1.442695
        %v410 = vpow.pop %v409
        %v411 = vsel %vm404, %v410, 0.0
        %412 = vadd.xlane.f32.xlu0 %v411
        %v413 = vpop.xlane.xlu0 %412
        %v414 = vrcp.pop %v413
        %v415 = vmul.f32 %v410, %v414
        %v416 = vlaneseq
        %v417 = vshrl.u32 %v416, 7
        %v418 = vsub.s32 0, %v417
        %v419 = vrot.slane %v308, %v418
        %v420 = vmul.f32 %v415, %v419
        %v421 = vsel %vm404, %v420, 0.0
        %422 = vadd.xlane.f32.xlu0 %v421
        %v423 = vpop.xlane.xlu0 %422
        %424 = vxpose.xlu0.b32.start [1/16] %v423, 128
        %425 = vxpose.xlu0.b32.cont [2/16] 0.0, 128
        %426 = vxpose.xlu0.b32.cont [3/16] 0.0, 128
        %427 = vxpose.xlu0.b32.cont [4/16] 0.0, 128
        %428 = vxpose.xlu0.b32.cont [5/16] 0.0, 128
        %429 = vxpose.xlu0.b32.cont [6/16] 0.0, 128
        %430 = vxpose.xlu0.b32.cont [7/16] 0.0, 128
        %431 = vxpose.xlu0.b32.cont [8/16] 0.0, 128
        %432 = vxpose.xlu0.b32.cont [9/16] 0.0, 128
        %433 = vxpose.xlu0.b32.cont [10/16] 0.0, 128
        %434 = vxpose.xlu0.b32.cont [11/16] 0.0, 128
        %435 = vxpose.xlu0.b32.cont [12/16] 0.0, 128
        %436 = vxpose.xlu0.b32.cont [13/16] 0.0, 128
        %437 = vxpose.xlu0.b32.cont [14/16] 0.0, 128
        %438 = vxpose.xlu0.b32.cont [15/16] 0.0, 128
        %439 = vxpose.xlu0.b32.end [16/16] 0.0, 128
        %v440 = vpop.trf.xlu0
        %v441 = vpop.trf.xlu0
        %v442 = vpop.trf.xlu0
        %v443 = vpop.trf.xlu0
        %v444 = vpop.trf.xlu0
        %v445 = vpop.trf.xlu0
        %v446 = vpop.trf.xlu0
        %v447 = vpop.trf.xlu0
        %v448 = vpop.trf.xlu0
        %v449 = vpop.trf.xlu0
        %v450 = vpop.trf.xlu0
        %v451 = vpop.trf.xlu0
        %v452 = vpop.trf.xlu0
        %v453 = vpop.trf.xlu0
        %v454 = vpop.trf.xlu0
        %v455 = vpop.trf.xlu0
        %vm456 = vcmask 57344
        %v457 = vsel %vm456, %v440, -inf
        %458 = vmax.xlane.f32.xlu0 %v457
        %v459 = vpop.xlane.xlu0 %458
        %v460 = vsub.f32 %v440, %v459
        %v461 = vmul.f32 %v460, 1.442695
        %v462 = vpow.pop %v461
        %v463 = vsel %vm456, %v462, 0.0
        %464 = vadd.xlane.f32.xlu0 %v463
        %v465 = vpop.xlane.xlu0 %464
        %v466 = vrcp.pop %v465
        %v467 = vmul.f32 %v462, %v466
        %468 = vst.msk [vmem:[%s200] sm:$0x1] %vm456, %v467
        %s469 = sand.u32 %s120, 1
        %s470 = scalar_lea.sflag [#allocation3], %s469
        %s471 = sand.u32 %s120, 1
        %s472 = scalar_lea.vmem [#allocation2], %s471
        // Predicated region
        $region37: #{tpu_custom_call.1} parent=35 // pred_check
          %p473 = pneg %p130
        $region38: #{tpu_custom_call.1} parent=35 // pred_check_branch
          %475 = sbr.rel (%p473) target = $region40
        $region39: #{tpu_custom_call.1} parent=35 // pred_region
          %s477 = ssub.s32 16, 16
          %478 = vsyncadd %s470, %s477
          %s479 = smul.addr %s18, 16
          %s480 = scalar_lea.hbm %s4, %s479
          %s482 = sshll.u32 %s472, 4
          %s483 = int_to_ptr.vmem [resolvable:$true] %s482
          %485 = dma.vmem_to_hbm [thread:$0]  %s483, 16, %s480, %s470
        $region40: #{tpu_custom_call.1} parent=35 // pred_fallthru
          _
      $region36: #{tpu_custom_call.1} parent=5 // pred_fallthru
        _
      %p486 = scmp.le.s32.totalorder 2, %s13
      // Predicated region
      $region41: #{tpu_custom_call.1} parent=5 // pred_check
        %p487 = pneg %p486
      $region42: #{tpu_custom_call.1} parent=5 // pred_check_branch
        %489 = sbr.rel (%p487) target = $region44
      $region43: #{tpu_custom_call.1} parent=5 // pred_region
        %s490 = ssub.s32 %s13, 2
        // Predicated region
        $region45: #{tpu_custom_call.1} parent=43 // pred_check
          %p491 = pneg %p136
        $region46: #{tpu_custom_call.1} parent=43 // pred_check_branch
          %493 = sbr.rel (%p491) target = $region48
        $region47: #{tpu_custom_call.1} parent=43 // pred_region
          %s494 = sand.u32 %s121, 1
          %s495 = scalar_lea.sflag [#allocation3], %s494
          %s496 = sand.u32 %s121, 1
          %s497 = scalar_lea.vmem [#allocation2], %s496
          %498 = dma.done %s495, 16
        $region48: #{tpu_custom_call.1} parent=43 // pred_fallthru
          _
      $region44: #{tpu_custom_call.1} parent=5 // pred_fallthru
        _
    $region6: #{tpu_custom_call.1} parent=1 // loop_footer
      %s17 = sadd.s32 1, %s13
    $region7: #{tpu_custom_call.1} parent=1 // loop_footer_branch
      %12 = sbr.rel target = $region3
    $region8: #{tpu_custom_call.1} parent=1 // loop_exit
      _
    %499 = vsyncpa [#allocation3], 1
    %s500 = scalar_lea.sflag [#allocation3], 1
    %501 = vsyncpa %s500, 1

</llo_original>
